<compile_context>
chip_gen: v5e
topology: v5e:2x2
jax: 0.10.0
libtpu: 0.0.40
codegen_flags: <defaults>
</compile_context>

<pallas_src>
import functools

import jax
import jax.numpy as jnp
from jax.experimental import pallas as pl
from jax.experimental.pallas import tpu as pltpu


def _round_up(n, m):
    return ((n + m - 1) // m) * m


def _mlp_kernel(x_ref, t_ref, w1_ref, b1_ref, w2_ref, b2_ref, w3_ref, b3_ref,
                o_ref, xs_ref, *, d, matmul_dtype):
    tb_blk, Kp = xs_ref.shape

    # Stage the lane-dense first-layer operand in VMEM scratch:
    #   cols [0, d) <- x tile, col d <- t, cols (d, Kp) <- zeros.
    # The tail is zeroed every step: the scratch is uninitialized VMEM and stray
    # NaN/Inf bit patterns would poison the matmul even though W1's padded rows
    # are zero (NaN * 0 = NaN).
    xs_ref[:, :d] = x_ref[...].astype(jnp.float32)
    xs_ref[:, d:d + 1] = t_ref[...].astype(jnp.float32)
    if Kp > d + 1:  # static Python condition; no-op when d + 1 == Kp
        xs_ref[:, d + 1:] = jnp.zeros((tb_blk, Kp - (d + 1)), jnp.float32)

    x = xs_ref[...].astype(matmul_dtype)
    h = jnp.dot(x, w1_ref[...], preferred_element_type=jnp.float32)
    h = jnp.maximum(h + b1_ref[...], 0.0)                       # f32 epilogue
    h = jnp.dot(h.astype(matmul_dtype), w2_ref[...],
                preferred_element_type=jnp.float32)
    h = jnp.maximum(h + b2_ref[...], 0.0)
    o = jnp.dot(h.astype(matmul_dtype), w3_ref[...],
                preferred_element_type=jnp.float32)
    o_ref[...] = (o + b3_ref[...]).astype(o_ref.dtype)


def simple_feedforward_pallas(x, t, params, *, tb=1024, matmul_dtype=jnp.bfloat16):
    """x: (B, d) f32, t: (B,) f32. Returns (B, d) == net(concat([x, t], -1)).

    With the default matmul_dtype=bf16 expect ~1e-2 relative error vs an f32
    reference; pass matmul_dtype=jnp.float32 for bit-for-bit-ish accuracy.
    """
    B, d = x.shape
    w1, b1, w2, b2, w3, b3 = params          # w1: (d+1, H1), w2: (H1, H2), w3: (H2, d)
    H1, H2 = w1.shape[1], w2.shape[1]

    # --- lane-dense padding of the feature dims --------------------------------
    Kp = _round_up(d + 1, 128)               # layer-1 contraction dim (x ++ t ++ zeros)
    Dp = _round_up(d, 128)                   # output dim (lane-dense stores)

    # --- batch tiling -----------------------------------------------------------
    tb = _round_up(max(8, min(tb, B)), 8)
    # v7x megacore: keep >= 2 grid steps when possible so the "parallel" batch
    # axis can be sharded across both TensorCores.
    tb = min(tb, max(8, _round_up(-(-B // 2), 8)))
    Bp = _round_up(B, tb)
    grid = (Bp // tb,)

    # --- activations streamed in the matmul dtype (halves HBM read in bf16) -----
    x_in = x.astype(matmul_dtype)
    t_in = t.reshape(B, 1).astype(matmul_dtype)
    if Bp != B:
        x_in = jnp.pad(x_in, ((0, Bp - B), (0, 0)))
        t_in = jnp.pad(t_in, ((0, Bp - B), (0, 0)))

    # --- weights: zero-padded to lane-dense shapes, cast once -------------------
    w1p = jnp.zeros((Kp, H1), matmul_dtype).at[:d + 1, :].set(w1.astype(matmul_dtype))
    w2c = w2.astype(matmul_dtype)
    w3p = jnp.zeros((H2, Dp), matmul_dtype).at[:, :d].set(w3.astype(matmul_dtype))
    b1r = b1.reshape(1, H1).astype(jnp.float32)
    b2r = b2.reshape(1, H2).astype(jnp.float32)
    b3p = jnp.zeros((1, Dp), jnp.float32).at[:, :d].set(b3.astype(jnp.float32))

    const = lambda i: (0, 0)                 # weights/biases: single block, reused

    act_bytes = jnp.dtype(matmul_dtype).itemsize
    out_bytes = jnp.dtype(x.dtype).itemsize
    w_elems = Kp * H1 + H1 * H2 + H2 * Dp
    flops = 2 * Bp * w_elems
    bytes_accessed = (act_bytes * Bp * (d + 1)
                      + out_bytes * Bp * Dp
                      + act_bytes * w_elems
                      + 4 * (H1 + H2 + Dp))

    # Per-step VMEM estimate: double-buffered x/t/out tiles, staging scratch,
    # double-buffered weights, f32 intermediates headroom.  Only override the
    # scoped VMEM limit when it would actually be needed (keeps v5e's 16 MiB
    # default safe at the default tb; 56 MiB stays below v7x's 64 MiB physical).
    vmem_est = (2 * tb * (d + 1) * act_bytes
                + tb * Kp * 4
                + 2 * tb * Dp * out_bytes
                + 2 * w_elems * act_bytes
                + 2 * (H1 + H2 + Dp) * 4
                + 3 * tb * max(H1, H2) * 4)
    cp_kwargs = dict(dimension_semantics=("parallel",))
    if vmem_est > 10 * 2**20:
        cp_kwargs["vmem_limit_bytes"] = int(min(56 * 2**20, vmem_est + 8 * 2**20))

    out = pl.pallas_call(
        functools.partial(_mlp_kernel, d=d, matmul_dtype=matmul_dtype),
        out_shape=jax.ShapeDtypeStruct((Bp, Dp), x.dtype),
        grid_spec=pltpu.PrefetchScalarGridSpec(
            num_scalar_prefetch=0,
            grid=grid,
            in_specs=[
                pl.BlockSpec((tb, d), lambda i: (i, 0)),    # x tile (full last dim d)
                pl.BlockSpec((tb, 1), lambda i: (i, 0)),    # t tile
                pl.BlockSpec((Kp, H1), const),              # W1 (rows padded to Kp)
                pl.BlockSpec((1, H1), const),               # b1
                pl.BlockSpec((H1, H2), const),              # W2
                pl.BlockSpec((1, H2), const),               # b2
                pl.BlockSpec((H2, Dp), const),              # W3 (cols padded to Dp)
                pl.BlockSpec((1, Dp), const),               # b3 (padded)
            ],
            out_specs=pl.BlockSpec((tb, Dp), lambda i: (i, 0)),
            scratch_shapes=[pltpu.VMEM((tb, Kp), jnp.float32)],  # staging for [x|t|0]
        ),
        compiler_params=pltpu.CompilerParams(**cp_kwargs),
        cost_estimate=pl.CostEstimate(
            flops=flops, transcendentals=0, bytes_accessed=bytes_accessed),
    )(x_in, t_in, w1p, b1r, w2c, b2r, w3p, b3p)

    return out[:B, :d]


def init_params(key, d, hidden_sizes=(256, 256)):
    """Deterministic init mirroring nn.Linear shapes (stored transposed: (in, out))."""
    dims = [d + 1] + list(hidden_sizes) + [d]
    params = []
    for i in range(len(dims) - 1):
        fan_in, fan_out = dims[i], dims[i + 1]
        key, kw, kb = jax.random.split(key, 3)
        bound = 1.0 / float(fan_in) ** 0.5
        w = jax.random.uniform(kw, (fan_in, fan_out), jnp.float32, -bound, bound)
        b = jax.random.uniform(kb, (fan_out,), jnp.float32, -bound, bound)
        params += [w, b]
    return tuple(params)


def reference_forward(x, t, params):
    w1, b1, w2, b2, w3, b3 = params
    h = jnp.concatenate([x, t[:, None]], axis=-1)
    h = jnp.maximum(h @ w1 + b1, 0.0)
    h = jnp.maximum(h @ w2 + b2, 0.0)
    return h @ w3 + b3


if __name__ == "__main__":
    d = 32
    key = jax.random.PRNGKey(0)
    kx, kt, kp = jax.random.split(key, 3)
    params = init_params(kp, d)

    # default path: bf16 matmuls, f32 accumulation + f32 epilogue (loose tolerance)
    B = 8
    x = jax.random.normal(kx, (B, d), jnp.float32)
    t = jax.random.normal(kt, (B,), jnp.float32)
    ref = reference_forward(x, t, params)
    out = jax.block_until_ready(simple_feedforward_pallas(x, t, params))
    assert out.shape == (B, d)
    assert jnp.allclose(out, ref, atol=1e-1, rtol=1e-1)

    # ragged batch — exercises the B % tb != 0 padding path (default bf16)
    B2 = 10
    kx2, kt2 = jax.random.split(jax.random.PRNGKey(1))
    x2 = jax.random.normal(kx2, (B2, d), jnp.float32)
    t2 = jax.random.normal(kt2, (B2,), jnp.float32)
    out2 = jax.block_until_ready(simple_feedforward_pallas(x2, t2, params))
    assert out2.shape == (B2, d)
    assert jnp.allclose(out2, reference_forward(x2, t2, params), atol=1e-1, rtol=1e-1)

    # f32 matmul path — tight tolerance
    out_f32 = jax.block_until_ready(
        simple_feedforward_pallas(x, t, params, matmul_dtype=jnp.float32))
    assert jnp.allclose(out_f32, ref, atol=1e-4, rtol=1e-4)

    print("KERNEL_OK")
</pallas_src>

<mosaic_0001>
module attributes {stable_mosaic.version = 11 : i64} {
  func.func @_mlp_kernel(%arg0: i32, %arg1: memref<8x32xbf16, #tpu.memory_space<vmem>>, %arg2: memref<8x1xbf16, #tpu.memory_space<vmem>>, %arg3: memref<128x256xbf16, #tpu.memory_space<vmem>>, %arg4: memref<1x256xf32, #tpu.memory_space<vmem>>, %arg5: memref<256x256xbf16, #tpu.memory_space<vmem>>, %arg6: memref<1x256xf32, #tpu.memory_space<vmem>>, %arg7: memref<256x128xbf16, #tpu.memory_space<vmem>>, %arg8: memref<1x128xf32, #tpu.memory_space<vmem>>, %arg9: memref<8x128xf32, #tpu.memory_space<vmem>>, %arg10: memref<8x128xf32, #tpu.memory_space<vmem>>) attributes {dimension_semantics = [#tpu.dimension_semantics<parallel>], iteration_bounds = array<i64: 1>, scalar_prefetch = 0 : i64, scratch_operands = 1 : i64, tpu.core_type = #tpu.core_type<tc>, window_params = [{transform_indices = @transform_0, window_bounds = array<i64: 8, 32>}, {transform_indices = @transform_1, window_bounds = array<i64: 8, 1>}, {pipeline_mode = #tpu.pipeline_mode<synchronous>, transform_indices = @transform_2, window_bounds = array<i64: 128, 256>}, {pipeline_mode = #tpu.pipeline_mode<synchronous>, transform_indices = @transform_3, window_bounds = array<i64: 1, 256>}, {pipeline_mode = #tpu.pipeline_mode<synchronous>, transform_indices = @transform_4, window_bounds = array<i64: 256, 256>}, {pipeline_mode = #tpu.pipeline_mode<synchronous>, transform_indices = @transform_5, window_bounds = array<i64: 1, 256>}, {pipeline_mode = #tpu.pipeline_mode<synchronous>, transform_indices = @transform_6, window_bounds = array<i64: 256, 128>}, {pipeline_mode = #tpu.pipeline_mode<synchronous>, transform_indices = @transform_7, window_bounds = array<i64: 1, 128>}, {transform_indices = @transform_8, window_bounds = array<i64: 8, 128>}]} {
    %c0 = arith.constant 0 : index
    %c0_0 = arith.constant 0 : index
    %0 = vector.load %arg1[%c0, %c0_0] : memref<8x32xbf16, #tpu.memory_space<vmem>>, vector<8x32xbf16>
    %1 = arith.extf %0 : vector<8x32xbf16> to vector<8x32xf32>
    %c0_1 = arith.constant 0 : index
    %c0_2 = arith.constant 0 : index
    %2 = vector.load %arg10[%c0_1, %c0_2] : memref<8x128xf32, #tpu.memory_space<vmem>>, vector<8x32xf32>
    tpu.vector_store %arg10[%c0_1, %c0_2], %1 {strides = array<i32>} : memref<8x128xf32, #tpu.memory_space<vmem>>, vector<8x32xf32>,
    %c0_3 = arith.constant 0 : index
    %c0_4 = arith.constant 0 : index
    %3 = vector.load %arg2[%c0_3, %c0_4] : memref<8x1xbf16, #tpu.memory_space<vmem>>, vector<8x1xbf16>
    %4 = arith.extf %3 : vector<8x1xbf16> to vector<8x1xf32>
    %c0_5 = arith.constant 0 : index
    %c32 = arith.constant 32 : index
    %5 = vector.load %arg10[%c0_5, %c32] : memref<8x128xf32, #tpu.memory_space<vmem>>, vector<8x1xf32>
    tpu.vector_store %arg10[%c0_5, %c32], %4 {strides = array<i32>} : memref<8x128xf32, #tpu.memory_space<vmem>>, vector<8x1xf32>,
    %cst = arith.constant 0.000000e+00 : f32
    %6 = vector.broadcast %cst : f32 to vector<8x95xf32>
    %c0_6 = arith.constant 0 : index
    %c33 = arith.constant 33 : index
    %7 = vector.load %arg10[%c0_6, %c33] : memref<8x128xf32, #tpu.memory_space<vmem>>, vector<8x95xf32>
    tpu.vector_store %arg10[%c0_6, %c33], %6 {strides = array<i32>} : memref<8x128xf32, #tpu.memory_space<vmem>>, vector<8x95xf32>,
    %c0_7 = arith.constant 0 : index
    %c0_8 = arith.constant 0 : index
    %8 = vector.load %arg10[%c0_7, %c0_8] : memref<8x128xf32, #tpu.memory_space<vmem>>, vector<8x128xf32>
    %9 = arith.truncf %8 : vector<8x128xf32> to vector<8x128xbf16>
    %c0_9 = arith.constant 0 : index
    %c0_10 = arith.constant 0 : index
    %10 = vector.load %arg3[%c0_9, %c0_10] : memref<128x256xbf16, #tpu.memory_space<vmem>>, vector<128x256xbf16>
    %cst_11 = arith.constant dense<0.000000e+00> : vector<8x256xf32>
    %11 = tpu.matmul %9, %10, %cst_11 {dimension_numbers = #tpu.dot_dimension_numbers<[1], [0], [0], [1], [0, 0, 1, 1], [], []>} : vector<8x128xbf16>, vector<128x256xbf16>, vector<8x256xf32> -> vector<8x256xf32>
    %c0_12 = arith.constant 0 : index
    %c0_13 = arith.constant 0 : index
    %12 = vector.load %arg4[%c0_12, %c0_13] : memref<1x256xf32, #tpu.memory_space<vmem>>, vector<1x256xf32>
    %13 = vector.broadcast %12 : vector<1x256xf32> to vector<8x256xf32>
    %14 = arith.addf %11, %13 : vector<8x256xf32>
    %cst_14 = arith.constant 0.000000e+00 : f32
    %15 = vector.broadcast %cst_14 : f32 to vector<8x256xf32>
    %16 = arith.maximumf %14, %15 : vector<8x256xf32>
    %17 = arith.truncf %16 : vector<8x256xf32> to vector<8x256xbf16>
    %c0_15 = arith.constant 0 : index
    %c0_16 = arith.constant 0 : index
    %18 = vector.load %arg5[%c0_15, %c0_16] : memref<256x256xbf16, #tpu.memory_space<vmem>>, vector<256x256xbf16>
    %cst_17 = arith.constant dense<0.000000e+00> : vector<8x256xf32>
    %19 = tpu.matmul %17, %18, %cst_17 {dimension_numbers = #tpu.dot_dimension_numbers<[1], [0], [0], [1], [0, 0, 1, 1], [], []>} : vector<8x256xbf16>, vector<256x256xbf16>, vector<8x256xf32> -> vector<8x256xf32>
    %c0_18 = arith.constant 0 : index
    %c0_19 = arith.constant 0 : index
    %20 = vector.load %arg6[%c0_18, %c0_19] : memref<1x256xf32, #tpu.memory_space<vmem>>, vector<1x256xf32>
    %21 = vector.broadcast %20 : vector<1x256xf32> to vector<8x256xf32>
    %22 = arith.addf %19, %21 : vector<8x256xf32>
    %cst_20 = arith.constant 0.000000e+00 : f32
    %23 = vector.broadcast %cst_20 : f32 to vector<8x256xf32>
    %24 = arith.maximumf %22, %23 : vector<8x256xf32>
    %25 = arith.truncf %24 : vector<8x256xf32> to vector<8x256xbf16>
    %c0_21 = arith.constant 0 : index
    %c0_22 = arith.constant 0 : index
    %26 = vector.load %arg7[%c0_21, %c0_22] : memref<256x128xbf16, #tpu.memory_space<vmem>>, vector<256x128xbf16>
    %cst_23 = arith.constant dense<0.000000e+00> : vector<8x128xf32>
    %27 = tpu.matmul %25, %26, %cst_23 {dimension_numbers = #tpu.dot_dimension_numbers<[1], [0], [0], [1], [0, 0, 1, 1], [], []>} : vector<8x256xbf16>, vector<256x128xbf16>, vector<8x128xf32> -> vector<8x128xf32>
    %c0_24 = arith.constant 0 : index
    %c0_25 = arith.constant 0 : index
    %28 = vector.load %arg8[%c0_24, %c0_25] : memref<1x128xf32, #tpu.memory_space<vmem>>, vector<1x128xf32>
    %29 = vector.broadcast %28 : vector<1x128xf32> to vector<8x128xf32>
    %30 = arith.addf %27, %29 : vector<8x128xf32>
    %c0_26 = arith.constant 0 : index
    %c0_27 = arith.constant 0 : index
    %31 = vector.load %arg9[%c0_26, %c0_27] : memref<8x128xf32, #tpu.memory_space<vmem>>, vector<8x128xf32>
    tpu.vector_store %arg9[%c0_26, %c0_27], %30 {strides = array<i32>} : memref<8x128xf32, #tpu.memory_space<vmem>>, vector<8x128xf32>,
    return
  }
  func.func @transform_0(%arg0: i32) -> (i32, i32) {
    %c0_i32 = arith.constant 0 : i32
    %c0_i32_0 = arith.constant 0 : i32
    return %arg0, %c0_i32 : i32, i32
  }
  func.func @transform_1(%arg0: i32) -> (i32, i32) {
    %c0_i32 = arith.constant 0 : i32
    %c0_i32_0 = arith.constant 0 : i32
    return %arg0, %c0_i32 : i32, i32
  }
  func.func @transform_2(%arg0: i32) -> (i32, i32) {
    %c0_i32 = arith.constant 0 : i32
    %c0_i32_0 = arith.constant 0 : i32
    %c0_i32_1 = arith.constant 0 : i32
    return %c0_i32, %c0_i32_0 : i32, i32
  }
  func.func @transform_3(%arg0: i32) -> (i32, i32) {
    %c0_i32 = arith.constant 0 : i32
    %c0_i32_0 = arith.constant 0 : i32
    %c0_i32_1 = arith.constant 0 : i32
    return %c0_i32, %c0_i32_0 : i32, i32
  }
  func.func @transform_4(%arg0: i32) -> (i32, i32) {
    %c0_i32 = arith.constant 0 : i32
    %c0_i32_0 = arith.constant 0 : i32
    %c0_i32_1 = arith.constant 0 : i32
    return %c0_i32, %c0_i32_0 : i32, i32
  }
  func.func @transform_5(%arg0: i32) -> (i32, i32) {
    %c0_i32 = arith.constant 0 : i32
    %c0_i32_0 = arith.constant 0 : i32
    %c0_i32_1 = arith.constant 0 : i32
    return %c0_i32, %c0_i32_0 : i32, i32
  }
  func.func @transform_6(%arg0: i32) -> (i32, i32) {
    %c0_i32 = arith.constant 0 : i32
    %c0_i32_0 = arith.constant 0 : i32
    %c0_i32_1 = arith.constant 0 : i32
    return %c0_i32, %c0_i32_0 : i32, i32
  }
  func.func @transform_7(%arg0: i32) -> (i32, i32) {
    %c0_i32 = arith.constant 0 : i32
    %c0_i32_0 = arith.constant 0 : i32
    %c0_i32_1 = arith.constant 0 : i32
    return %c0_i32, %c0_i32_0 : i32, i32
  }
  func.func @transform_8(%arg0: i32) -> (i32, i32) {
    %c0_i32 = arith.constant 0 : i32
    %c0_i32_0 = arith.constant 0 : i32
    return %arg0, %c0_i32 : i32, i32
  }
}

</mosaic_0001>

<llo_original>
// kernel: tpu_custom_call.1
$region0: #{tpu_custom_call.1}
  #allocation0 [shape = 'u32[]', space=smem, size = 0x4, offset = 0x4, fixed_abs, tag = 'smem constant byte address 0x4 - core index']
  #allocation1 [shape = 'u32[72,128]{1,0:T(1,128)}', space=vmem, size = 0x9000, scoped, tag = 'internal scratch']
  #allocation2 [shape = 'f32[8,128]{1,0:T(8,128)}', space=vmem, size = 0x1000, scoped, tag = 'scratch operand']
  %s0 = inlined_call_operand.vmem [shape: bf16[8,32], index: 0, kind: input, shape index: {}]
  %s1 = inlined_call_operand.vmem [shape: bf16[8,1], index: 1, kind: input, shape index: {}]
  %s2 = inlined_call_operand.hbm [shape: bf16[128,256], index: 2, kind: input, shape index: {}]
  %s3 = inlined_call_operand.vmem [shape: f32[1,256], index: 3, kind: input, shape index: {}]
  %s4 = inlined_call_operand.hbm [shape: bf16[256,256], index: 4, kind: input, shape index: {}]
  %s5 = inlined_call_operand.vmem [shape: f32[1,256], index: 5, kind: input, shape index: {}]
  %s6 = inlined_call_operand.hbm [shape: bf16[256,128], index: 6, kind: input, shape index: {}]
  %s7 = inlined_call_operand.vmem [shape: f32[1,128], index: 7, kind: input, shape index: {}]
  %s8 = inlined_call_operand.hbm [shape: f32[8,128], index: 8, kind: output, shape index: {}]
  %s9 = sld [smem:[#allocation0]]
  $region54: #{tpu_custom_call.1} parent=0
    _
  %s11 = ssub.s32 1, %s9
  %s12 = scalar_select 0, %s11, %s9
  $region1: #{tpu_custom_call.1} parent=0
    #allocation3 [shape = 'u8[65536]{0}', space=vmem, size = 0x10000, scoped, tag = 'input window, operand 2, single buffered']
    #allocation4 [shape = 's32[1]{0}', space=sflag, size = 0x4, scoped, tag = 'scoped memory for tpu_custom_call.1']
    #allocation5 [shape = 's32[1]{0}', space=sflag, size = 0x4, scoped, tag = 'scoped memory for tpu_custom_call.1']
    #allocation6 [shape = 'u8[131072]{0}', space=vmem, size = 0x20000, scoped, tag = 'input window, operand 4, single buffered']
    #allocation7 [shape = 's32[1]{0}', space=sflag, size = 0x4, scoped, tag = 'scoped memory for tpu_custom_call.1']
    #allocation8 [shape = 'u8[65536]{0}', space=vmem, size = 0x10000, scoped, tag = 'input window, operand 6, single buffered']
    #allocation9 [shape = 'u8[4096]{0}', space=vmem, size = 0x1000, scoped, tag = 'output window, operand 0, single buffered']
    %13 = vsyncpa [#allocation4], 0
    %14 = vsyncpa [#allocation7], 0
    %15 = vsyncpa [#allocation5], 0
    // Predicated region
    $region2: #{tpu_custom_call.1} parent=1 // pred_check
      _
    $region3: #{tpu_custom_call.1} parent=1 // pred_check_branch
      %17 = sbr.rel (0) target = $region5
    $region4: #{tpu_custom_call.1} parent=1 // pred_region
      _
    $region5: #{tpu_custom_call.1} parent=1 // pred_fallthru
      _
    // Predicated region
    $region6: #{tpu_custom_call.1} parent=1 // pred_check
      _
    $region7: #{tpu_custom_call.1} parent=1 // pred_check_branch
      %19 = sbr.rel (0) target = $region9
    $region8: #{tpu_custom_call.1} parent=1 // pred_region
      _
    $region9: #{tpu_custom_call.1} parent=1 // pred_fallthru
      _
    // Predicated region
    $region10: #{tpu_custom_call.1} parent=1 // pred_check
      _
    $region11: #{tpu_custom_call.1} parent=1 // pred_check_branch
      %21 = sbr.rel (0) target = $region13
    $region12: #{tpu_custom_call.1} parent=1 // pred_region
      %23 = vsyncadd [#allocation4], 0
      %s24 = sshll.u32 %s2, 4
      %s25 = int_to_ptr.hbm [resolvable:$true] %s24
      %s26 = sshll.u32 [#allocation3], 4
      %s27 = int_to_ptr.vmem [resolvable:$true] %s26
      %32 = dma.hbm_to_vmem [thread:$0]  %s25, 2048, %s27, [#allocation4], 128, 128, 8
    $region13: #{tpu_custom_call.1} parent=1 // pred_fallthru
      _
    // Predicated region
    $region14: #{tpu_custom_call.1} parent=1 // pred_check
      _
    $region15: #{tpu_custom_call.1} parent=1 // pred_check_branch
      %34 = sbr.rel (0) target = $region17
    $region16: #{tpu_custom_call.1} parent=1 // pred_region
      _
    $region17: #{tpu_custom_call.1} parent=1 // pred_fallthru
      _
    // Predicated region
    $region18: #{tpu_custom_call.1} parent=1 // pred_check
      _
    $region19: #{tpu_custom_call.1} parent=1 // pred_check_branch
      %36 = sbr.rel (0) target = $region21
    $region20: #{tpu_custom_call.1} parent=1 // pred_region
      %38 = vsyncadd [#allocation7], 0
      %s39 = sshll.u32 %s4, 4
      %s40 = int_to_ptr.hbm [resolvable:$true] %s39
      %s41 = sshll.u32 [#allocation6], 4
      %s42 = int_to_ptr.vmem [resolvable:$true] %s41
      %47 = dma.hbm_to_vmem [thread:$0]  %s40, 4096, %s42, [#allocation7], 128, 128, 8
    $region21: #{tpu_custom_call.1} parent=1 // pred_fallthru
      _
    // Predicated region
    $region22: #{tpu_custom_call.1} parent=1 // pred_check
      _
    $region23: #{tpu_custom_call.1} parent=1 // pred_check_branch
      %49 = sbr.rel (0) target = $region25
    $region24: #{tpu_custom_call.1} parent=1 // pred_region
      _
    $region25: #{tpu_custom_call.1} parent=1 // pred_fallthru
      _
    // Predicated region
    $region26: #{tpu_custom_call.1} parent=1 // pred_check
      _
    $region27: #{tpu_custom_call.1} parent=1 // pred_check_branch
      %51 = sbr.rel (0) target = $region29
    $region28: #{tpu_custom_call.1} parent=1 // pred_region
      %53 = vsyncadd [#allocation7], 0
      %s54 = sshll.u32 %s6, 4
      %s55 = int_to_ptr.hbm [resolvable:$true] %s54
      %s56 = sshll.u32 [#allocation8], 4
      %s57 = int_to_ptr.vmem [resolvable:$true] %s56
      %62 = dma.hbm_to_vmem [thread:$0]  %s55, 2048, %s57, [#allocation7], 64, 64, 4
    $region29: #{tpu_custom_call.1} parent=1 // pred_fallthru
      _
    // Predicated region
    $region30: #{tpu_custom_call.1} parent=1 // pred_check
      _
    $region31: #{tpu_custom_call.1} parent=1 // pred_check_branch
      %64 = sbr.rel (0) target = $region33
    $region32: #{tpu_custom_call.1} parent=1 // pred_region
      _
    $region33: #{tpu_custom_call.1} parent=1 // pred_fallthru
      _
    // Predicated region
    $region34: #{tpu_custom_call.1} parent=1 // pred_check
      _
    $region35: #{tpu_custom_call.1} parent=1 // pred_check_branch
      %66 = sbr.rel (0) target = $region37
    $region36: #{tpu_custom_call.1} parent=1 // pred_region
      %68 = dma.done [#allocation4], 2048
    $region37: #{tpu_custom_call.1} parent=1 // pred_fallthru
      _
    // Predicated region
    $region38: #{tpu_custom_call.1} parent=1 // pred_check
      _
    $region39: #{tpu_custom_call.1} parent=1 // pred_check_branch
      %70 = sbr.rel (0) target = $region41
    $region40: #{tpu_custom_call.1} parent=1 // pred_region
      %72 = dma.done [#allocation7], 4096
    $region41: #{tpu_custom_call.1} parent=1 // pred_fallthru
      _
    // Predicated region
    $region42: #{tpu_custom_call.1} parent=1 // pred_check
      _
    $region43: #{tpu_custom_call.1} parent=1 // pred_check_branch
      %74 = sbr.rel (0) target = $region45
    $region44: #{tpu_custom_call.1} parent=1 // pred_region
      %76 = dma.done [#allocation7], 2048
    $region45: #{tpu_custom_call.1} parent=1 // pred_fallthru
      _
    %v77 = vld [vmem:[%s0] sm:$0xf]
    %v78 = vunpack.c.l.bf16 %v77
    %vm79 = vcmask 261120
    %80 = vst.msk [vmem:[#allocation2] sm:$0xff] %vm79, %v78
    %v81 = vld [vmem:[%s1] sm:$0xf]
    %v82 = vunpack.c.l.bf16 %v81
    %84 = vrot.lane.b32.xlu0 %v82, 32
    %v85 = vpop.permute.xlu0 %84
    %vm87 = vcmask 269568
    %88 = vst.msk [vmem:[#allocation2] sm:$0xff] %vm87, %v85
    %vm89 = vcmask 1047816
    %90 = vst.msk [vmem:[#allocation2] sm:$0xff] %vm89, 0.0
    %v91 = vld [vmem:[#allocation2] sm:$0xff]
    %v92 = vpack.c.bf16 %v91, %v91
    %v93 = vld [vmem:[#allocation3] sm:$0xff]
    %v94 = vld [vmem:[#allocation3 + $0x8] sm:$0xff]
    %v95 = vld [vmem:[#allocation3 + $0x10] sm:$0xff]
    %v96 = vld [vmem:[#allocation3 + $0x18] sm:$0xff]
    %v97 = vld [vmem:[#allocation3 + $0x20] sm:$0xff]
    %v98 = vld [vmem:[#allocation3 + $0x28] sm:$0xff]
    %v99 = vld [vmem:[#allocation3 + $0x30] sm:$0xff]
    %v100 = vld [vmem:[#allocation3 + $0x38] sm:$0xff]
    %v101 = vld [vmem:[#allocation3 + $0x40] sm:$0xff]
    %v102 = vld [vmem:[#allocation3 + $0x48] sm:$0xff]
    %v103 = vld [vmem:[#allocation3 + $0x50] sm:$0xff]
    %v104 = vld [vmem:[#allocation3 + $0x58] sm:$0xff]
    %v105 = vld [vmem:[#allocation3 + $0x60] sm:$0xff]
    %v106 = vld [vmem:[#allocation3 + $0x68] sm:$0xff]
    %v107 = vld [vmem:[#allocation3 + $0x70] sm:$0xff]
    %v108 = vld [vmem:[#allocation3 + $0x78] sm:$0xff]
    %v109 = vld [vmem:[%s3] sm:$0x3]
    %v111 = vperm.slane %v109, 0
    %v112 = vperm.slane %v109, 1
    %v131 = vunpack.c.l.b16 %v93
    %v132 = vunpack.c.h.b16 %v93
    %v133 = vunpack.c.l.b16 %v94
    %v134 = vunpack.c.h.b16 %v94
    %v135 = vunpack.c.l.b16 %v95
    %v136 = vunpack.c.h.b16 %v95
    %v137 = vunpack.c.l.b16 %v96
    %v138 = vunpack.c.h.b16 %v96
    %v139 = vunpack.c.l.b16 %v97
    %v140 = vunpack.c.h.b16 %v97
    %v141 = vunpack.c.l.b16 %v98
    %v142 = vunpack.c.h.b16 %v98
    %v143 = vunpack.c.l.b16 %v99
    %v144 = vunpack.c.h.b16 %v99
    %v145 = vunpack.c.l.b16 %v100
    %v146 = vunpack.c.h.b16 %v100
    %v147 = vunpack.c.l.b16 %v101
    %v148 = vunpack.c.h.b16 %v101
    %v149 = vunpack.c.l.b16 %v102
    %v150 = vunpack.c.h.b16 %v102
    %v151 = vunpack.c.l.b16 %v103
    %v152 = vunpack.c.h.b16 %v103
    %v153 = vunpack.c.l.b16 %v104
    %v154 = vunpack.c.h.b16 %v104
    %v155 = vunpack.c.l.b16 %v105
    %v156 = vunpack.c.h.b16 %v105
    %v157 = vunpack.c.l.b16 %v106
    %v158 = vunpack.c.h.b16 %v106
    %v159 = vunpack.c.l.b16 %v107
    %v160 = vunpack.c.h.b16 %v107
    %v161 = vunpack.c.l.b16 %v108
    %v162 = vunpack.c.h.b16 %v108
    %v163 = vpack.c.b16 %v133, %v131
    %v164 = vpack.c.b16 %v134, %v132
    %v165 = vpack.c.b16 %v137, %v135
    %v166 = vpack.c.b16 %v138, %v136
    %v167 = vpack.c.b16 %v141, %v139
    %v168 = vpack.c.b16 %v142, %v140
    %v169 = vpack.c.b16 %v145, %v143
    %v170 = vpack.c.b16 %v146, %v144
    %v171 = vpack.c.b16 %v149, %v147
    %v172 = vpack.c.b16 %v150, %v148
    %v173 = vpack.c.b16 %v153, %v151
    %v174 = vpack.c.b16 %v154, %v152
    %v175 = vpack.c.b16 %v157, %v155
    %v176 = vpack.c.b16 %v158, %v156
    %v177 = vpack.c.b16 %v161, %v159
    %v178 = vpack.c.b16 %v162, %v160
    %195 = vmatpush.bf16.msra.mxu0 %v177
    %196 = vmatpush.bf16.msra.mxu0 %v175
    %197 = vmatpush.bf16.msra.mxu0 %v173
    %198 = vmatpush.bf16.msra.mxu0 %v171
    %199 = vmatpush.bf16.msra.mxu0 %v169
    %200 = vmatpush.bf16.msra.mxu0 %v167
    %201 = vmatpush.bf16.msra.mxu0 %v165
    %202 = vmatpush.bf16.msra.mxu0 %v163
    %203 = vmatmul.bf16.gmra.mxu0 %v92
    %v204 = vpop.f32.mrf.mxu0
    %v205 = vadd.f32 %v111, %v204
    %v206 = vpop.f32.mrf.mxu0
    %207 = vdwg.mxu0
    %208 = vmatpush.bf16.msra.mxu0 %v178
    %209 = vmatpush.bf16.msra.mxu0 %v176
    %210 = vmatpush.bf16.msra.mxu0 %v174
    %211 = vmatpush.bf16.msra.mxu0 %v172
    %212 = vmatpush.bf16.msra.mxu0 %v170
    %213 = vmatpush.bf16.msra.mxu0 %v168
    %214 = vmatpush.bf16.msra.mxu0 %v166
    %215 = vmatpush.bf16.msra.mxu0 %v164
    %216 = vmatmul.bf16.gmra.mxu0 %v92
    %v217 = vpop.f32.mrf.mxu0
    %v218 = vadd.f32 %v112, %v217
    %v219 = vpop.f32.mrf.mxu0
    %220 = vdwg.mxu0
    %v221 = vmax.f32 %v205, 0.0
    %v222 = vmax.f32 %v218, 0.0
    %v223 = vpack.c.bf16 %v221, %v221
    %v224 = vpack.c.bf16 %v222, %v222
    %v225 = vld [vmem:[#allocation6] sm:$0xff]
    %v226 = vld [vmem:[#allocation6 + $0x8] sm:$0xff]
    %v227 = vld [vmem:[#allocation6 + $0x10] sm:$0xff]
    %v228 = vld [vmem:[#allocation6 + $0x18] sm:$0xff]
    %v229 = vld [vmem:[#allocation6 + $0x20] sm:$0xff]
    %v230 = vld [vmem:[#allocation6 + $0x28] sm:$0xff]
    %v231 = vld [vmem:[#allocation6 + $0x30] sm:$0xff]
    %v232 = vld [vmem:[#allocation6 + $0x38] sm:$0xff]
    %v233 = vld [vmem:[#allocation6 + $0x40] sm:$0xff]
    %v234 = vld [vmem:[#allocation6 + $0x48] sm:$0xff]
    %v235 = vld [vmem:[#allocation6 + $0x50] sm:$0xff]
    %v236 = vld [vmem:[#allocation6 + $0x58] sm:$0xff]
    %v237 = vld [vmem:[#allocation6 + $0x60] sm:$0xff]
    %v238 = vld [vmem:[#allocation6 + $0x68] sm:$0xff]
    %v239 = vld [vmem:[#allocation6 + $0x70] sm:$0xff]
    %v240 = vld [vmem:[#allocation6 + $0x78] sm:$0xff]
    %v241 = vld [vmem:[#allocation6 + $0x80] sm:$0xff]
    %v242 = vld [vmem:[#allocation6 + $0x88] sm:$0xff]
    %v243 = vld [vmem:[#allocation6 + $0x90] sm:$0xff]
    %v244 = vld [vmem:[#allocation6 + $0x98] sm:$0xff]
    %v245 = vld [vmem:[#allocation6 + $0xa0] sm:$0xff]
    %v246 = vld [vmem:[#allocation6 + $0xa8] sm:$0xff]
    %v247 = vld [vmem:[#allocation6 + $0xb0] sm:$0xff]
    %v248 = vld [vmem:[#allocation6 + $0xb8] sm:$0xff]
    %v249 = vld [vmem:[#allocation6 + $0xc0] sm:$0xff]
    %v250 = vld [vmem:[#allocation6 + $0xc8] sm:$0xff]
    %v251 = vld [vmem:[#allocation6 + $0xd0] sm:$0xff]
    %v252 = vld [vmem:[#allocation6 + $0xd8] sm:$0xff]
    %v253 = vld [vmem:[#allocation6 + $0xe0] sm:$0xff]
    %v254 = vld [vmem:[#allocation6 + $0xe8] sm:$0xff]
    %v255 = vld [vmem:[#allocation6 + $0xf0] sm:$0xff]
    %v256 = vld [vmem:[#allocation6 + $0xf8] sm:$0xff]
    %v257 = vld [vmem:[%s5] sm:$0x3]
    %v259 = vperm.slane %v257, 0
    %v260 = vperm.slane %v257, 1
    %v295 = vunpack.c.l.b16 %v225
    %v296 = vunpack.c.h.b16 %v225
    %v297 = vunpack.c.l.b16 %v226
    %v298 = vunpack.c.h.b16 %v226
    %v299 = vunpack.c.l.b16 %v227
    %v300 = vunpack.c.h.b16 %v227
    %v301 = vunpack.c.l.b16 %v228
    %v302 = vunpack.c.h.b16 %v228
    %v303 = vunpack.c.l.b16 %v229
    %v304 = vunpack.c.h.b16 %v229
    %v305 = vunpack.c.l.b16 %v230
    %v306 = vunpack.c.h.b16 %v230
    %v307 = vunpack.c.l.b16 %v231
    %v308 = vunpack.c.h.b16 %v231
    %v309 = vunpack.c.l.b16 %v232
    %v310 = vunpack.c.h.b16 %v232
    %v311 = vunpack.c.l.b16 %v233
    %v312 = vunpack.c.h.b16 %v233
    %v313 = vunpack.c.l.b16 %v234
    %v314 = vunpack.c.h.b16 %v234
    %v315 = vunpack.c.l.b16 %v235
    %v316 = vunpack.c.h.b16 %v235
    %v317 = vunpack.c.l.b16 %v236
    %v318 = vunpack.c.h.b16 %v236
    %v319 = vunpack.c.l.b16 %v237
    %v320 = vunpack.c.h.b16 %v237
    %v321 = vunpack.c.l.b16 %v238
    %v322 = vunpack.c.h.b16 %v238
    %v323 = vunpack.c.l.b16 %v239
    %v324 = vunpack.c.h.b16 %v239
    %v325 = vunpack.c.l.b16 %v240
    %v326 = vunpack.c.h.b16 %v240
    %v327 = vunpack.c.l.b16 %v241
    %v328 = vunpack.c.h.b16 %v241
    %v329 = vunpack.c.l.b16 %v242
    %v330 = vunpack.c.h.b16 %v242
    %v331 = vunpack.c.l.b16 %v243
    %v332 = vunpack.c.h.b16 %v243
    %v333 = vunpack.c.l.b16 %v244
    %v334 = vunpack.c.h.b16 %v244
    %v335 = vunpack.c.l.b16 %v245
    %v336 = vunpack.c.h.b16 %v245
    %v337 = vunpack.c.l.b16 %v246
    %v338 = vunpack.c.h.b16 %v246
    %v339 = vunpack.c.l.b16 %v247
    %v340 = vunpack.c.h.b16 %v247
    %v341 = vunpack.c.l.b16 %v248
    %v342 = vunpack.c.h.b16 %v248
    %v343 = vunpack.c.l.b16 %v249
    %v344 = vunpack.c.h.b16 %v249
    %v345 = vunpack.c.l.b16 %v250
    %v346 = vunpack.c.h.b16 %v250
    %v347 = vunpack.c.l.b16 %v251
    %v348 = vunpack.c.h.b16 %v251
    %v349 = vunpack.c.l.b16 %v252
    %v350 = vunpack.c.h.b16 %v252
    %v351 = vunpack.c.l.b16 %v253
    %v352 = vunpack.c.h.b16 %v253
    %v353 = vunpack.c.l.b16 %v254
    %v354 = vunpack.c.h.b16 %v254
    %v355 = vunpack.c.l.b16 %v255
    %v356 = vunpack.c.h.b16 %v255
    %v357 = vunpack.c.l.b16 %v256
    %v358 = vunpack.c.h.b16 %v256
    %v359 = vpack.c.b16 %v297, %v295
    %v360 = vpack.c.b16 %v298, %v296
    %v361 = vpack.c.b16 %v301, %v299
    %v362 = vpack.c.b16 %v302, %v300
    %v363 = vpack.c.b16 %v305, %v303
    %v364 = vpack.c.b16 %v306, %v304
    %v365 = vpack.c.b16 %v309, %v307
    %v366 = vpack.c.b16 %v310, %v308
    %v367 = vpack.c.b16 %v313, %v311
    %v368 = vpack.c.b16 %v314, %v312
    %v369 = vpack.c.b16 %v317, %v315
    %v370 = vpack.c.b16 %v318, %v316
    %v371 = vpack.c.b16 %v321, %v319
    %v372 = vpack.c.b16 %v322, %v320
    %v373 = vpack.c.b16 %v325, %v323
    %v374 = vpack.c.b16 %v326, %v324
    %v375 = vpack.c.b16 %v329, %v327
    %v376 = vpack.c.b16 %v330, %v328
    %v377 = vpack.c.b16 %v333, %v331
    %v378 = vpack.c.b16 %v334, %v332
    %v379 = vpack.c.b16 %v337, %v335
    %v380 = vpack.c.b16 %v338, %v336
    %v381 = vpack.c.b16 %v341, %v339
    %v382 = vpack.c.b16 %v342, %v340
    %v383 = vpack.c.b16 %v345, %v343
    %v384 = vpack.c.b16 %v346, %v344
    %v385 = vpack.c.b16 %v349, %v347
    %v386 = vpack.c.b16 %v350, %v348
    %v387 = vpack.c.b16 %v353, %v351
    %v388 = vpack.c.b16 %v354, %v352
    %v389 = vpack.c.b16 %v357, %v355
    %v390 = vpack.c.b16 %v358, %v356
    %423 = vmatpush.bf16.msra.mxu0 %v373
    %424 = vmatpush.bf16.msra.mxu0 %v371
    %425 = vmatpush.bf16.msra.mxu0 %v369
    %426 = vmatpush.bf16.msra.mxu0 %v367
    %427 = vmatpush.bf16.msra.mxu0 %v365
    %428 = vmatpush.bf16.msra.mxu0 %v363
    %429 = vmatpush.bf16.msra.mxu0 %v361
    %430 = vmatpush.bf16.msra.mxu0 %v359
    %431 = vmatmul.bf16.gmra.mxu0 %v223
    %v432 = vpop.f32.mrf.mxu0
    %v433 = vadd.f32 %v259, %v432
    %v434 = vpop.f32.mrf.mxu0
    %435 = vdwg.mxu0
    %436 = vmatpush.bf16.msra.mxu0 %v389
    %437 = vmatpush.bf16.msra.mxu0 %v387
    %438 = vmatpush.bf16.msra.mxu0 %v385
    %439 = vmatpush.bf16.msra.mxu0 %v383
    %440 = vmatpush.bf16.msra.mxu0 %v381
    %441 = vmatpush.bf16.msra.mxu0 %v379
    %442 = vmatpush.bf16.msra.mxu0 %v377
    %443 = vmatpush.bf16.msra.mxu0 %v375
    %444 = vmatmul.bf16.gmra.mxu0 %v224
    %v445 = vpop.f32.mrf.mxu0
    %v446 = vadd.f32 %v433, %v445
    %v447 = vpop.f32.mrf.mxu0
    %448 = vdwg.mxu0
    %449 = vmatpush.bf16.msra.mxu0 %v374
    %450 = vmatpush.bf16.msra.mxu0 %v372
    %451 = vmatpush.bf16.msra.mxu0 %v370
    %452 = vmatpush.bf16.msra.mxu0 %v368
    %453 = vmatpush.bf16.msra.mxu0 %v366
    %454 = vmatpush.bf16.msra.mxu0 %v364
    %455 = vmatpush.bf16.msra.mxu0 %v362
    %456 = vmatpush.bf16.msra.mxu0 %v360
    %457 = vmatmul.bf16.gmra.mxu0 %v223
    %v458 = vpop.f32.mrf.mxu0
    %v459 = vadd.f32 %v260, %v458
    %v460 = vpop.f32.mrf.mxu0
    %461 = vdwg.mxu0
    %462 = vmatpush.bf16.msra.mxu0 %v390
    %463 = vmatpush.bf16.msra.mxu0 %v388
    %464 = vmatpush.bf16.msra.mxu0 %v386
    %465 = vmatpush.bf16.msra.mxu0 %v384
    %466 = vmatpush.bf16.msra.mxu0 %v382
    %467 = vmatpush.bf16.msra.mxu0 %v380
    %468 = vmatpush.bf16.msra.mxu0 %v378
    %469 = vmatpush.bf16.msra.mxu0 %v376
    %470 = vmatmul.bf16.gmra.mxu0 %v224
    %v471 = vpop.f32.mrf.mxu0
    %v472 = vadd.f32 %v459, %v471
    %v473 = vpop.f32.mrf.mxu0
    %474 = vdwg.mxu0
    %v475 = vmax.f32 %v446, 0.0
    %v476 = vmax.f32 %v472, 0.0
    %v477 = vpack.c.bf16 %v475, %v475
    %v478 = vpack.c.bf16 %v476, %v476
    %v479 = vld [vmem:[#allocation8] sm:$0xf]
    %v480 = vld [vmem:[#allocation8 + $0x4] sm:$0xf]
    %v481 = vld [vmem:[#allocation8 + $0x8] sm:$0xf]
    %v482 = vld [vmem:[#allocation8 + $0xc] sm:$0xf]
    %v483 = vld [vmem:[#allocation8 + $0x10] sm:$0xf]
    %v484 = vld [vmem:[#allocation8 + $0x14] sm:$0xf]
    %v485 = vld [vmem:[#allocation8 + $0x18] sm:$0xf]
    %v486 = vld [vmem:[#allocation8 + $0x1c] sm:$0xf]
    %v487 = vld [vmem:[#allocation8 + $0x20] sm:$0xf]
    %v488 = vld [vmem:[#allocation8 + $0x24] sm:$0xf]
    %v489 = vld [vmem:[#allocation8 + $0x28] sm:$0xf]
    %v490 = vld [vmem:[#allocation8 + $0x2c] sm:$0xf]
    %v491 = vld [vmem:[#allocation8 + $0x30] sm:$0xf]
    %v492 = vld [vmem:[#allocation8 + $0x34] sm:$0xf]
    %v493 = vld [vmem:[#allocation8 + $0x38] sm:$0xf]
    %v494 = vld [vmem:[#allocation8 + $0x3c] sm:$0xf]
    %v495 = vld [vmem:[#allocation8 + $0x40] sm:$0xf]
    %v496 = vld [vmem:[#allocation8 + $0x44] sm:$0xf]
    %v497 = vld [vmem:[#allocation8 + $0x48] sm:$0xf]
    %v498 = vld [vmem:[#allocation8 + $0x4c] sm:$0xf]
    %v499 = vld [vmem:[#allocation8 + $0x50] sm:$0xf]
    %v500 = vld [vmem:[#allocation8 + $0x54] sm:$0xf]
    %v501 = vld [vmem:[#allocation8 + $0x58] sm:$0xf]
    %v502 = vld [vmem:[#allocation8 + $0x5c] sm:$0xf]
    %v503 = vld [vmem:[#allocation8 + $0x60] sm:$0xf]
    %v504 = vld [vmem:[#allocation8 + $0x64] sm:$0xf]
    %v505 = vld [vmem:[#allocation8 + $0x68] sm:$0xf]
    %v506 = vld [vmem:[#allocation8 + $0x6c] sm:$0xf]
    %v507 = vld [vmem:[#allocation8 + $0x70] sm:$0xf]
    %v508 = vld [vmem:[#allocation8 + $0x74] sm:$0xf]
    %v509 = vld [vmem:[#allocation8 + $0x78] sm:$0xf]
    %v510 = vld [vmem:[#allocation8 + $0x7c] sm:$0xf]
    %v511 = vld [vmem:[%s7] sm:$0x1]
    %v513 = vperm.slane %v511, 0
    %v547 = vunpack.c.l.b16 %v479
    %v548 = vunpack.c.l.b16 %v480
    %v549 = vunpack.c.l.b16 %v481
    %v550 = vunpack.c.l.b16 %v482
    %v551 = vunpack.c.l.b16 %v483
    %v552 = vunpack.c.l.b16 %v484
    %v553 = vunpack.c.l.b16 %v485
    %v554 = vunpack.c.l.b16 %v486
    %v555 = vunpack.c.l.b16 %v487
    %v556 = vunpack.c.l.b16 %v488
    %v557 = vunpack.c.l.b16 %v489
    %v558 = vunpack.c.l.b16 %v490
    %v559 = vunpack.c.l.b16 %v491
    %v560 = vunpack.c.l.b16 %v492
    %v561 = vunpack.c.l.b16 %v493
    %v562 = vunpack.c.l.b16 %v494
    %v563 = vunpack.c.l.b16 %v495
    %v564 = vunpack.c.l.b16 %v496
    %v565 = vunpack.c.l.b16 %v497
    %v566 = vunpack.c.l.b16 %v498
    %v567 = vunpack.c.l.b16 %v499
    %v568 = vunpack.c.l.b16 %v500
    %v569 = vunpack.c.l.b16 %v501
    %v570 = vunpack.c.l.b16 %v502
    %v571 = vunpack.c.l.b16 %v503
    %v572 = vunpack.c.l.b16 %v504
    %v573 = vunpack.c.l.b16 %v505
    %v574 = vunpack.c.l.b16 %v506
    %v575 = vunpack.c.l.b16 %v507
    %v576 = vunpack.c.l.b16 %v508
    %v577 = vunpack.c.l.b16 %v509
    %v578 = vunpack.c.l.b16 %v510
    %v579 = vpack.c.b16 %v548, %v547
    %v580 = vpack.c.b16 %v550, %v549
    %v581 = vpack.c.b16 %v552, %v551
    %v582 = vpack.c.b16 %v554, %v553
    %v583 = vpack.c.b16 %v556, %v555
    %v584 = vpack.c.b16 %v558, %v557
    %v585 = vpack.c.b16 %v560, %v559
    %v586 = vpack.c.b16 %v562, %v561
    %v587 = vpack.c.b16 %v564, %v563
    %v588 = vpack.c.b16 %v566, %v565
    %v589 = vpack.c.b16 %v568, %v567
    %v590 = vpack.c.b16 %v570, %v569
    %v591 = vpack.c.b16 %v572, %v571
    %v592 = vpack.c.b16 %v574, %v573
    %v593 = vpack.c.b16 %v576, %v575
    %v594 = vpack.c.b16 %v578, %v577
    %611 = vmatpush.bf16.msra.mxu0 %v586
    %612 = vmatpush.bf16.msra.mxu0 %v585
    %613 = vmatpush.bf16.msra.mxu0 %v584
    %614 = vmatpush.bf16.msra.mxu0 %v583
    %615 = vmatpush.bf16.msra.mxu0 %v582
    %616 = vmatpush.bf16.msra.mxu0 %v581
    %617 = vmatpush.bf16.msra.mxu0 %v580
    %618 = vmatpush.bf16.msra.mxu0 %v579
    %619 = vmatmul.bf16.gmra.mxu0 %v477
    %v620 = vpop.f32.mrf.mxu0
    %v621 = vadd.f32 %v513, %v620
    %v622 = vpop.f32.mrf.mxu0
    %623 = vdwg.mxu0
    %624 = vmatpush.bf16.msra.mxu0 %v594
    %625 = vmatpush.bf16.msra.mxu0 %v593
    %626 = vmatpush.bf16.msra.mxu0 %v592
    %627 = vmatpush.bf16.msra.mxu0 %v591
    %628 = vmatpush.bf16.msra.mxu0 %v590
    %629 = vmatpush.bf16.msra.mxu0 %v589
    %630 = vmatpush.bf16.msra.mxu0 %v588
    %631 = vmatpush.bf16.msra.mxu0 %v587
    %632 = vmatmul.bf16.gmra.mxu0 %v478
    %v633 = vpop.f32.mrf.mxu0
    %v634 = vadd.f32 %v621, %v633
    %v635 = vpop.f32.mrf.mxu0
    %636 = vdwg.mxu0
    %637 = vst [vmem:[#allocation9] sm:$0xff] %v634
    // Predicated region
    $region46: #{tpu_custom_call.1} parent=1 // pred_check
      _
    $region47: #{tpu_custom_call.1} parent=1 // pred_check_branch
      %639 = sbr.rel (0) target = $region49
    $region48: #{tpu_custom_call.1} parent=1 // pred_region
      %641 = vsyncadd [#allocation5], 0
      %s643 = sshll.u32 [#allocation9], 4
      %s644 = int_to_ptr.vmem [resolvable:$true] %s643
      %s645 = sshll.u32 %s8, 4
      %s646 = int_to_ptr.hbm [resolvable:$true] %s645
      %648 = dma.vmem_to_hbm [thread:$0]  %s644, 128, %s646, [#allocation5]
    $region49: #{tpu_custom_call.1} parent=1 // pred_fallthru
      _
    // Predicated region
    $region50: #{tpu_custom_call.1} parent=1 // pred_check
      _
    $region51: #{tpu_custom_call.1} parent=1 // pred_check_branch
      %650 = sbr.rel (0) target = $region53
    $region52: #{tpu_custom_call.1} parent=1 // pred_region
      %652 = dma.done [#allocation5], 128
    $region53: #{tpu_custom_call.1} parent=1 // pred_fallthru
      _
    %653 = vsyncpa [#allocation4], 1
    %654 = vsyncpa [#allocation7], 1
    %655 = vsyncpa [#allocation5], 1

</llo_original>
